<compile_context>
chip_gen: v6e
topology: v6e:2x2x1
jax: 0.10.0
libtpu: 0.0.40
codegen_flags: <defaults>
</compile_context>

<pallas_src>
import jax
import jax.numpy as jnp
from jax.experimental import pallas as pl
from jax.experimental.pallas import tpu as pltpu


# ---------------------------------------------------------------------------
# Kernels
# ---------------------------------------------------------------------------
def _augru_step_kernel(x_ref, hx_ref, att_ref,
                       wg_ref, bg_ref, wh_ref, bh_ref,
                       out_ref):
    """One AUGRU cell step for a tile of rows (the module's forward)."""
    x = x_ref[...].astype(jnp.float32)          # (tm, I)
    h = hx_ref[...].astype(jnp.float32)         # (tm, H)
    att = att_ref[...].astype(jnp.float32)      # (tm, 1)
    H = hx_ref.shape[-1]
    wdt = wg_ref.dtype                          # MXU input dtype (f32 or bf16)

    # Fused matmul #1: r and z pre-activations.  K = I + H, N = 2H.
    xh = jnp.concatenate([x, h], axis=-1)                       # (tm, I+H)
    gates = (jnp.dot(xh.astype(wdt), wg_ref[...],
                     preferred_element_type=jnp.float32)
             + bg_ref[...].astype(jnp.float32))                 # (tm, 2H)
    r = jax.nn.sigmoid(gates[:, :H])
    z = jax.nn.sigmoid(gates[:, H:])

    # Fused matmul #2: h_tilda pre-activation ((r * hx) @ w_hh, as in PyTorch).
    xrh = jnp.concatenate([x, r * h], axis=-1)                  # (tm, I+H)
    h_tilda = jnp.tanh(jnp.dot(xrh.astype(wdt), wh_ref[...],
                               preferred_element_type=jnp.float32)
                       + bh_ref[...].astype(jnp.float32))       # (tm, H)

    # Attention-scaled update gate + blend (f32 elementwise on the VPU/EUP).
    z_att = att * z
    out_ref[...] = ((1.0 - z_att) * h + z_att * h_tilda).astype(out_ref.dtype)


def _augru_seq_kernel(x_ref, att_ref, h0_ref,
                      wg_ref, bg_ref, wh_ref, bh_ref,
                      hy_ref, h_scr):
    """DIEN recurrence: each grid step handles a block of time steps.

    Hidden state is carried across grid steps in a VMEM f32 scratch; weights
    use constant index_maps so they stay resident across the whole sequence.
    """
    tb = pl.program_id(0)

    @pl.when(tb == 0)
    def _():
        h_scr[...] = h0_ref[...].astype(jnp.float32)

    t_block = x_ref.shape[0]
    H = h_scr.shape[-1]
    wdt = wg_ref.dtype

    # Hoist weight/bias loads + casts out of the unrolled time loop.
    w_g = wg_ref[...]
    w_h = wh_ref[...]
    b_g = bg_ref[...].astype(jnp.float32)
    b_h = bh_ref[...].astype(jnp.float32)

    h = h_scr[...]                                              # (B, H) f32
    for s in range(t_block):                                    # static unroll
        x = x_ref[s].astype(jnp.float32)                        # (B, I)
        att = att_ref[s].astype(jnp.float32)                    # (B, 1)

        xh = jnp.concatenate([x, h], axis=-1)
        gates = (jnp.dot(xh.astype(wdt), w_g,
                         preferred_element_type=jnp.float32) + b_g)
        r = jax.nn.sigmoid(gates[:, :H])
        z = jax.nn.sigmoid(gates[:, H:])

        xrh = jnp.concatenate([x, r * h], axis=-1)
        h_tilda = jnp.tanh(jnp.dot(xrh.astype(wdt), w_h,
                                   preferred_element_type=jnp.float32) + b_h)

        z_att = att * z
        h = (1.0 - z_att) * h + z_att * h_tilda
        hy_ref[s] = h.astype(hy_ref.dtype)

    h_scr[...] = h


# ---------------------------------------------------------------------------
# Wrappers
# ---------------------------------------------------------------------------
def fuse_params(params, matmul_dtype=jnp.float32):
    """Concatenate the 6 weight matrices into 2 fused ones (done once)."""
    w_gates = jnp.concatenate(
        [jnp.concatenate([params["w_xr"], params["w_xz"]], axis=1),
         jnp.concatenate([params["w_hr"], params["w_hz"]], axis=1)],
        axis=0).astype(matmul_dtype)                               # (I+H, 2H)
    b_gates = jnp.concatenate([params["b_r"], params["b_z"]]
                              ).reshape(1, -1).astype(jnp.float32)  # (1, 2H)
    w_h = jnp.concatenate([params["w_xh"], params["w_hh"]],
                          axis=0).astype(matmul_dtype)              # (I+H, H)
    b_h = params["b_h"].reshape(1, -1).astype(jnp.float32)          # (1, H)
    return {"w_gates": w_gates, "b_gates": b_gates, "w_h": w_h, "b_h": b_h}


def augru_forward(x, hx, att_score, fused):
    """Single AUGRU step (the module forward). x:(T,I) hx:(T,H) att:(T,)."""
    T, I = x.shape
    H = hx.shape[1]
    att2d = att_score.reshape(T, 1)
    w_g, b_g, w_h, b_h = (fused["w_gates"], fused["b_gates"],
                          fused["w_h"], fused["b_h"])

    block_m = T if T <= 256 else 256
    grid = (pl.cdiv(T, block_m),)

    itemsize = jnp.dtype(x.dtype).itemsize
    bytes_accessed = int(sum(int(a.size) * jnp.dtype(a.dtype).itemsize
                             for a in (x, hx, att2d, w_g, b_g, w_h, b_h))
                         + T * H * itemsize)
    cost = pl.CostEstimate(flops=int(2 * T * (I + H) * 3 * H),
                           transcendentals=int(3 * T * H),
                           bytes_accessed=bytes_accessed)

    return pl.pallas_call(
        _augru_step_kernel,
        out_shape=jax.ShapeDtypeStruct((T, H), x.dtype),
        grid=grid,
        in_specs=[
            pl.BlockSpec((block_m, I), lambda i: (i, 0)),
            pl.BlockSpec((block_m, H), lambda i: (i, 0)),
            pl.BlockSpec((block_m, 1), lambda i: (i, 0)),
            pl.BlockSpec(w_g.shape, lambda i: (0, 0)),   # weights VMEM-resident
            pl.BlockSpec(b_g.shape, lambda i: (0, 0)),
            pl.BlockSpec(w_h.shape, lambda i: (0, 0)),
            pl.BlockSpec(b_h.shape, lambda i: (0, 0)),
        ],
        out_specs=pl.BlockSpec((block_m, H), lambda i: (i, 0)),
        compiler_params=pltpu.CompilerParams(
            dimension_semantics=("parallel",)),
        cost_estimate=cost,
    )(x, hx, att2d, w_g, b_g, w_h, b_h)


def augru_sequence_forward(x_seq, h0, att_seq, fused, t_block=None):
    """Whole DIEN AUGRU recurrence in one pallas_call.

    x_seq:(S,B,I) h0:(B,H) att_seq:(S,B) -> hy_seq:(S,B,H)
    """
    S, B, I = x_seq.shape
    H = h0.shape[-1]
    if t_block is None:
        t_block = next(tb for tb in (8, 4, 2, 1) if S % tb == 0)
    assert S % t_block == 0, "t_block must divide the sequence length"

    att3d = att_seq.reshape(S, B, 1)
    w_g, b_g, w_h, b_h = (fused["w_gates"], fused["b_gates"],
                          fused["w_h"], fused["b_h"])

    itemsize = jnp.dtype(x_seq.dtype).itemsize
    bytes_accessed = int(sum(int(a.size) * jnp.dtype(a.dtype).itemsize
                             for a in (x_seq, att3d, h0, w_g, b_g, w_h, b_h))
                         + S * B * H * itemsize)
    cost = pl.CostEstimate(flops=int(2 * S * B * (I + H) * 3 * H),
                           transcendentals=int(3 * S * B * H),
                           bytes_accessed=bytes_accessed)

    return pl.pallas_call(
        _augru_seq_kernel,
        out_shape=jax.ShapeDtypeStruct((S, B, H), x_seq.dtype),
        grid=(S // t_block,),
        in_specs=[
            pl.BlockSpec((t_block, B, I), lambda t: (t, 0, 0)),
            pl.BlockSpec((t_block, B, 1), lambda t: (t, 0, 0)),
            pl.BlockSpec((B, H), lambda t: (0, 0)),
            pl.BlockSpec(w_g.shape, lambda t: (0, 0)),   # weights VMEM-resident
            pl.BlockSpec(b_g.shape, lambda t: (0, 0)),
            pl.BlockSpec(w_h.shape, lambda t: (0, 0)),
            pl.BlockSpec(b_h.shape, lambda t: (0, 0)),
        ],
        out_specs=pl.BlockSpec((t_block, B, H), lambda t: (t, 0, 0)),
        scratch_shapes=[pltpu.VMEM((B, H), jnp.float32)],   # hidden-state carry
        compiler_params=pltpu.CompilerParams(
            dimension_semantics=("arbitrary",)),             # sequential in time
        cost_estimate=cost,
    )(x_seq, att3d, h0, w_g, b_g, w_h, b_h)


# ---------------------------------------------------------------------------
# Init + pure-JAX references
# ---------------------------------------------------------------------------
def init_params(key, input_size, hidden_size):
    stdv = 1.0 / (hidden_size ** 0.5)
    names_shapes = [
        ("w_xr", (input_size, hidden_size)),
        ("w_hr", (hidden_size, hidden_size)),
        ("b_r", (hidden_size,)),
        ("w_xh", (input_size, hidden_size)),
        ("w_hh", (hidden_size, hidden_size)),
        ("b_h", (hidden_size,)),
        ("w_xz", (input_size, hidden_size)),
        ("w_hz", (hidden_size, hidden_size)),
        ("b_z", (hidden_size,)),
    ]
    keys = jax.random.split(key, len(names_shapes))
    return {name: jax.random.uniform(k, shape, jnp.float32, -stdv, stdv)
            for k, (name, shape) in zip(keys, names_shapes)}


def augru_reference(x, hx, att_score, p):
    r = jax.nn.sigmoid(x @ p["w_xr"] + hx @ p["w_hr"] + p["b_r"])
    z = jax.nn.sigmoid(x @ p["w_xz"] + hx @ p["w_hz"] + p["b_z"])
    h_tilda = jnp.tanh(x @ p["w_xh"] + (r * hx) @ p["w_hh"] + p["b_h"])
    z = att_score.reshape(-1, 1) * z
    return (1.0 - z) * hx + z * h_tilda


def augru_sequence_reference(x_seq, h0, att_seq, p):
    def step(h, inp):
        x_t, a_t = inp
        h_new = augru_reference(x_t, h, a_t, p)
        return h_new, h_new
    _, hs = jax.lax.scan(step, h0, (x_seq, att_seq))
    return hs


# ---------------------------------------------------------------------------
# Demo / correctness check
# ---------------------------------------------------------------------------
if __name__ == "__main__":
    key = jax.random.PRNGKey(0)
    T, I, H = 8, 32, 32   # mini_step, input_size, hidden_size
    B, S = 8, 16          # batch rows and sequence length for the seq kernel

    k_p, k_x, k_h, k_a, k_xs, k_as = jax.random.split(key, 6)
    params = init_params(k_p, I, H)

    # ---- single-step AUGRU (exact module forward) -------------------------
    x = jax.random.normal(k_x, (T, I), jnp.float32)
    hx = jax.random.normal(k_h, (T, H), jnp.float32)
    att = jax.random.uniform(k_a, (T,), jnp.float32)

    fused_f32 = fuse_params(params, jnp.float32)
    hy = jax.block_until_ready(augru_forward(x, hx, att, fused_f32))
    ref = augru_reference(x, hx, att, params)
    assert hy.shape == (T, H)
    assert jnp.allclose(hy, ref, atol=1e-4, rtol=1e-4)

    # bf16 MXU-input / f32-accumulation fast path (v6e / v7x)
    fused_bf16 = fuse_params(params, jnp.bfloat16)
    hy_bf16 = jax.block_until_ready(augru_forward(x, hx, att, fused_bf16))
    assert jnp.allclose(hy_bf16, ref, atol=5e-2, rtol=5e-2)

    # ---- sequence-level DIEN recurrence in one pallas_call ----------------
    x_seq = jax.random.normal(k_xs, (S, B, I), jnp.float32)
    att_seq = jax.random.uniform(k_as, (S, B), jnp.float32)
    h0 = jnp.zeros((B, H), jnp.float32)

    hy_seq = jax.block_until_ready(
        augru_sequence_forward(x_seq, h0, att_seq, fused_f32))
    ref_seq = augru_sequence_reference(x_seq, h0, att_seq, params)
    assert hy_seq.shape == (S, B, H)
    assert jnp.allclose(hy_seq, ref_seq, atol=1e-4, rtol=1e-4)

    print("KERNEL_OK")
</pallas_src>

<mosaic_0001>
module attributes {stable_mosaic.version = 11 : i64} {
  func.func @_augru_step_kernel(%arg0: i32, %arg1: memref<8x32xf32, #tpu.memory_space<vmem>>, %arg2: memref<8x32xf32, #tpu.memory_space<vmem>>, %arg3: memref<8x1xf32, #tpu.memory_space<vmem>>, %arg4: memref<64x64xf32, #tpu.memory_space<vmem>>, %arg5: memref<1x64xf32, #tpu.memory_space<vmem>>, %arg6: memref<64x32xf32, #tpu.memory_space<vmem>>, %arg7: memref<1x32xf32, #tpu.memory_space<vmem>>, %arg8: memref<8x32xf32, #tpu.memory_space<vmem>>) attributes {dimension_semantics = [#tpu.dimension_semantics<parallel>], iteration_bounds = array<i64: 1>, scalar_prefetch = 0 : i64, scratch_operands = 0 : i64, tpu.core_type = #tpu.core_type<tc>, window_params = [{transform_indices = @transform_0, window_bounds = array<i64: 8, 32>}, {transform_indices = @transform_1, window_bounds = array<i64: 8, 32>}, {transform_indices = @transform_2, window_bounds = array<i64: 8, 1>}, {pipeline_mode = #tpu.pipeline_mode<synchronous>, transform_indices = @transform_3, window_bounds = array<i64: 64, 64>}, {pipeline_mode = #tpu.pipeline_mode<synchronous>, transform_indices = @transform_4, window_bounds = array<i64: 1, 64>}, {pipeline_mode = #tpu.pipeline_mode<synchronous>, transform_indices = @transform_5, window_bounds = array<i64: 64, 32>}, {pipeline_mode = #tpu.pipeline_mode<synchronous>, transform_indices = @transform_6, window_bounds = array<i64: 1, 32>}, {transform_indices = @transform_7, window_bounds = array<i64: 8, 32>}]} {
    %c0 = arith.constant 0 : index
    %c0_0 = arith.constant 0 : index
    %0 = vector.load %arg1[%c0, %c0_0] : memref<8x32xf32, #tpu.memory_space<vmem>>, vector<8x32xf32>
    %c0_1 = arith.constant 0 : index
    %c0_2 = arith.constant 0 : index
    %1 = vector.load %arg2[%c0_1, %c0_2] : memref<8x32xf32, #tpu.memory_space<vmem>>, vector<8x32xf32>
    %c0_3 = arith.constant 0 : index
    %c0_4 = arith.constant 0 : index
    %2 = vector.load %arg3[%c0_3, %c0_4] : memref<8x1xf32, #tpu.memory_space<vmem>>, vector<8x1xf32>
    %3 = tpu.concatenate %0, %1 in 1 : vector<8x32xf32>, vector<8x32xf32> -> vector<8x64xf32>
    %c0_5 = arith.constant 0 : index
    %c0_6 = arith.constant 0 : index
    %4 = vector.load %arg4[%c0_5, %c0_6] : memref<64x64xf32, #tpu.memory_space<vmem>>, vector<64x64xf32>
    %cst = arith.constant dense<0.000000e+00> : vector<8x64xf32>
    %5 = tpu.matmul %3, %4, %cst {dimension_numbers = #tpu.dot_dimension_numbers<[1], [0], [0], [1], [0, 0, 1, 1], [], []>} : vector<8x64xf32>, vector<64x64xf32>, vector<8x64xf32> -> vector<8x64xf32>
    %c0_7 = arith.constant 0 : index
    %c0_8 = arith.constant 0 : index
    %6 = vector.load %arg5[%c0_7, %c0_8] : memref<1x64xf32, #tpu.memory_space<vmem>>, vector<1x64xf32>
    %7 = vector.broadcast %6 : vector<1x64xf32> to vector<8x64xf32>
    %8 = arith.addf %5, %7 : vector<8x64xf32>
    %9 = vector.extract_strided_slice %8 {offsets = [0, 0], sizes = [8, 32], strides = [1, 1]} : vector<8x64xf32> to vector<8x32xf32>
    %10 = arith.negf %9 : vector<8x32xf32>
    %11 = math.exp %10 : vector<8x32xf32>
    %cst_9 = arith.constant 1.000000e+00 : f32
    %12 = vector.broadcast %cst_9 : f32 to vector<8x32xf32>
    %13 = arith.addf %12, %11 : vector<8x32xf32>
    %14 = arith.divf %12, %13 : vector<8x32xf32>
    %15 = vector.extract_strided_slice %8 {offsets = [0, 32], sizes = [8, 32], strides = [1, 1]} : vector<8x64xf32> to vector<8x32xf32>
    %16 = arith.negf %15 : vector<8x32xf32>
    %17 = math.exp %16 : vector<8x32xf32>
    %cst_10 = arith.constant 1.000000e+00 : f32
    %18 = vector.broadcast %cst_10 : f32 to vector<8x32xf32>
    %19 = arith.addf %18, %17 : vector<8x32xf32>
    %20 = arith.divf %18, %19 : vector<8x32xf32>
    %21 = arith.mulf %14, %1 : vector<8x32xf32>
    %22 = tpu.concatenate %0, %21 in 1 : vector<8x32xf32>, vector<8x32xf32> -> vector<8x64xf32>
    %c0_11 = arith.constant 0 : index
    %c0_12 = arith.constant 0 : index
    %23 = vector.load %arg6[%c0_11, %c0_12] : memref<64x32xf32, #tpu.memory_space<vmem>>, vector<64x32xf32>
    %cst_13 = arith.constant dense<0.000000e+00> : vector<8x32xf32>
    %24 = tpu.matmul %22, %23, %cst_13 {dimension_numbers = #tpu.dot_dimension_numbers<[1], [0], [0], [1], [0, 0, 1, 1], [], []>} : vector<8x64xf32>, vector<64x32xf32>, vector<8x32xf32> -> vector<8x32xf32>
    %c0_14 = arith.constant 0 : index
    %c0_15 = arith.constant 0 : index
    %25 = vector.load %arg7[%c0_14, %c0_15] : memref<1x32xf32, #tpu.memory_space<vmem>>, vector<1x32xf32>
    %26 = vector.broadcast %25 : vector<1x32xf32> to vector<8x32xf32>
    %27 = arith.addf %24, %26 : vector<8x32xf32>
    %28 = math.tanh %27 : vector<8x32xf32>
    %29 = vector.broadcast %2 : vector<8x1xf32> to vector<8x32xf32>
    %30 = arith.mulf %29, %20 : vector<8x32xf32>
    %cst_16 = arith.constant 1.000000e+00 : f32
    %31 = vector.broadcast %cst_16 : f32 to vector<8x32xf32>
    %32 = arith.subf %31, %30 : vector<8x32xf32>
    %33 = arith.mulf %32, %1 : vector<8x32xf32>
    %34 = arith.mulf %30, %28 : vector<8x32xf32>
    %35 = arith.addf %33, %34 : vector<8x32xf32>
    %c0_17 = arith.constant 0 : index
    %c0_18 = arith.constant 0 : index
    %36 = vector.load %arg8[%c0_17, %c0_18] : memref<8x32xf32, #tpu.memory_space<vmem>>, vector<8x32xf32>
    tpu.vector_store %arg8[%c0_17, %c0_18], %35 {strides = array<i32>} : memref<8x32xf32, #tpu.memory_space<vmem>>, vector<8x32xf32>,
    return
  }
  func.func @transform_0(%arg0: i32) -> (i32, i32) {
    %c0_i32 = arith.constant 0 : i32
    %c0_i32_0 = arith.constant 0 : i32
    return %arg0, %c0_i32 : i32, i32
  }
  func.func @transform_1(%arg0: i32) -> (i32, i32) {
    %c0_i32 = arith.constant 0 : i32
    %c0_i32_0 = arith.constant 0 : i32
    return %arg0, %c0_i32 : i32, i32
  }
  func.func @transform_2(%arg0: i32) -> (i32, i32) {
    %c0_i32 = arith.constant 0 : i32
    %c0_i32_0 = arith.constant 0 : i32
    return %arg0, %c0_i32 : i32, i32
  }
  func.func @transform_3(%arg0: i32) -> (i32, i32) {
    %c0_i32 = arith.constant 0 : i32
    %c0_i32_0 = arith.constant 0 : i32
    %c0_i32_1 = arith.constant 0 : i32
    return %c0_i32, %c0_i32_0 : i32, i32
  }
  func.func @transform_4(%arg0: i32) -> (i32, i32) {
    %c0_i32 = arith.constant 0 : i32
    %c0_i32_0 = arith.constant 0 : i32
    %c0_i32_1 = arith.constant 0 : i32
    return %c0_i32, %c0_i32_0 : i32, i32
  }
  func.func @transform_5(%arg0: i32) -> (i32, i32) {
    %c0_i32 = arith.constant 0 : i32
    %c0_i32_0 = arith.constant 0 : i32
    %c0_i32_1 = arith.constant 0 : i32
    return %c0_i32, %c0_i32_0 : i32, i32
  }
  func.func @transform_6(%arg0: i32) -> (i32, i32) {
    %c0_i32 = arith.constant 0 : i32
    %c0_i32_0 = arith.constant 0 : i32
    %c0_i32_1 = arith.constant 0 : i32
    return %c0_i32, %c0_i32_0 : i32, i32
  }
  func.func @transform_7(%arg0: i32) -> (i32, i32) {
    %c0_i32 = arith.constant 0 : i32
    %c0_i32_0 = arith.constant 0 : i32
    return %arg0, %c0_i32 : i32, i32
  }
}

</mosaic_0001>

<llo_original>
// kernel: tpu_custom_call.1
$region0: #{tpu_custom_call.1}
  #allocation0 [shape = 'u32[]', space=smem, size = 0x4, offset = 0x4, fixed_abs, tag = 'smem constant byte address 0x4 - core index']
  #allocation1 [shape = 'u32[144,128]{1,0:T(1,128)}', space=vmem, size = 0x12000, scoped, tag = 'internal scratch']
  %s0 = inlined_call_operand.vmem [shape: f32[8,32], index: 0, kind: input, shape index: {}]
  %s1 = inlined_call_operand.vmem [shape: f32[8,32], index: 1, kind: input, shape index: {}]
  %s2 = inlined_call_operand.vmem [shape: f32[8,1], index: 2, kind: input, shape index: {}]
  %s3 = inlined_call_operand.vmem [shape: f32[64,64], index: 3, kind: input, shape index: {}]
  %s4 = inlined_call_operand.vmem [shape: f32[1,64], index: 4, kind: input, shape index: {}]
  %s5 = inlined_call_operand.vmem [shape: f32[64,32], index: 5, kind: input, shape index: {}]
  %s6 = inlined_call_operand.vmem [shape: f32[1,32], index: 6, kind: input, shape index: {}]
  %s7 = inlined_call_operand.hbm [shape: f32[8,32], index: 7, kind: output, shape index: {}]
  %s8 = sld [smem:[#allocation0]]
  $region38: #{tpu_custom_call.1} parent=0
    _
  %s10 = ssub.s32 1, %s8
  %s11 = scalar_select 0, %s10, %s8
  $region1: #{tpu_custom_call.1} parent=0
    #allocation2 [shape = 'u8[4096]{0}', space=vmem, size = 0x1000, scoped, tag = 'output window, operand 0, single buffered']
    #allocation3 [shape = 's32[1]{0}', space=sflag, size = 0x4, scoped, tag = 'scoped memory for tpu_custom_call.1']
    %12 = vsyncpa [#allocation3], 0
    // Predicated region
    $region2: #{tpu_custom_call.1} parent=1 // pred_check
      _
    $region3: #{tpu_custom_call.1} parent=1 // pred_check_branch
      %14 = sbr.rel (0) target = $region5
    $region4: #{tpu_custom_call.1} parent=1 // pred_region
      _
    $region5: #{tpu_custom_call.1} parent=1 // pred_fallthru
      _
    // Predicated region
    $region6: #{tpu_custom_call.1} parent=1 // pred_check
      _
    $region7: #{tpu_custom_call.1} parent=1 // pred_check_branch
      %16 = sbr.rel (0) target = $region9
    $region8: #{tpu_custom_call.1} parent=1 // pred_region
      _
    $region9: #{tpu_custom_call.1} parent=1 // pred_fallthru
      _
    // Predicated region
    $region10: #{tpu_custom_call.1} parent=1 // pred_check
      _
    $region11: #{tpu_custom_call.1} parent=1 // pred_check_branch
      %18 = sbr.rel (0) target = $region13
    $region12: #{tpu_custom_call.1} parent=1 // pred_region
      _
    $region13: #{tpu_custom_call.1} parent=1 // pred_fallthru
      _
    // Predicated region
    $region14: #{tpu_custom_call.1} parent=1 // pred_check
      _
    $region15: #{tpu_custom_call.1} parent=1 // pred_check_branch
      %20 = sbr.rel (0) target = $region17
    $region16: #{tpu_custom_call.1} parent=1 // pred_region
      _
    $region17: #{tpu_custom_call.1} parent=1 // pred_fallthru
      _
    // Predicated region
    $region18: #{tpu_custom_call.1} parent=1 // pred_check
      _
    $region19: #{tpu_custom_call.1} parent=1 // pred_check_branch
      %22 = sbr.rel (0) target = $region21
    $region20: #{tpu_custom_call.1} parent=1 // pred_region
      _
    $region21: #{tpu_custom_call.1} parent=1 // pred_fallthru
      _
    // Predicated region
    $region22: #{tpu_custom_call.1} parent=1 // pred_check
      _
    $region23: #{tpu_custom_call.1} parent=1 // pred_check_branch
      %24 = sbr.rel (0) target = $region25
    $region24: #{tpu_custom_call.1} parent=1 // pred_region
      _
    $region25: #{tpu_custom_call.1} parent=1 // pred_fallthru
      _
    // Predicated region
    $region26: #{tpu_custom_call.1} parent=1 // pred_check
      _
    $region27: #{tpu_custom_call.1} parent=1 // pred_check_branch
      %26 = sbr.rel (0) target = $region29
    $region28: #{tpu_custom_call.1} parent=1 // pred_region
      _
    $region29: #{tpu_custom_call.1} parent=1 // pred_fallthru
      _
    %v27 = vld [vmem:[%s0] sm:$0xff]
    %v28 = vld [vmem:[%s1] sm:$0xff]
    %v29 = vld [vmem:[%s2] sm:$0xff]
    %31 = vrot.lane.b32.xlu0 %v28, 32
    %v32 = vpop.permute.xlu0 %31
    %vm34 = vcmask 261120
    %v35 = vsel %vm34, %v27, %v32
    %v36 = vld [vmem:[%s3] sm:$0xff]
    %v37 = vld [vmem:[%s3 + $0x8] sm:$0xff]
    %v38 = vld [vmem:[%s3 + $0x10] sm:$0xff]
    %v39 = vld [vmem:[%s3 + $0x18] sm:$0xff]
    %v40 = vld [vmem:[%s3 + $0x20] sm:$0xff]
    %v41 = vld [vmem:[%s3 + $0x28] sm:$0xff]
    %v42 = vld [vmem:[%s3 + $0x30] sm:$0xff]
    %v43 = vld [vmem:[%s3 + $0x38] sm:$0xff]
    %v44 = vld [vmem:[%s4] sm:$0x1]
    %v46 = vlaneseq
    %v47 = vshrl.u32 %v46, 7
    %v48 = vsub.s32 0, %v47
    %v49 = vrot.slane %v44, %v48
    %vm51 = vcmask 523264
    %v53 = vsel %vm51, %v35, 0
    %55 = vmatprep.subr.mxu0 0.0
    %56 = vmatpush1.msra.mxu0 0.0
    %57 = vmatprep.subr.mxu0 0.0
    %58 = vmatpush1.msra.mxu0 0.0
    %59 = vmatprep.subr.mxu0 0.0
    %60 = vmatpush1.msra.mxu0 0.0
    %61 = vmatprep.subr.mxu0 0.0
    %62 = vmatpush1.msra.mxu0 0.0
    %63 = vmatprep.subr.mxu0 0.0
    %64 = vmatpush1.msra.mxu0 0.0
    %65 = vmatprep.subr.mxu0 0.0
    %66 = vmatpush1.msra.mxu0 0.0
    %67 = vmatprep.subr.mxu0 0.0
    %68 = vmatpush1.msra.mxu0 0.0
    %69 = vmatprep.subr.mxu0 0.0
    %70 = vmatpush1.msra.mxu0 0.0
    %71 = vmatprep.subr.mxu0 0.0
    %72 = vmatpush1.msra.mxu0 %v43
    %73 = vmatprep.subr.mxu0 0.0
    %74 = vmatpush1.msra.mxu0 %v42
    %75 = vmatprep.subr.mxu0 0.0
    %76 = vmatpush1.msra.mxu0 %v41
    %77 = vmatprep.subr.mxu0 0.0
    %78 = vmatpush1.msra.mxu0 %v40
    %79 = vmatprep.subr.mxu0 0.0
    %80 = vmatpush1.msra.mxu0 %v39
    %81 = vmatprep.subr.mxu0 0.0
    %82 = vmatpush1.msra.mxu0 %v38
    %83 = vmatprep.subr.mxu0 0.0
    %84 = vmatpush1.msra.mxu0 %v37
    %85 = vmatprep.subr.mxu0 0.0
    %86 = vmatpush1.msra.mxu0 %v36
    %87 = vmatprep.subr.mxu0 0.0
    %88 = vmatpush2.msra.mxu0 0.0
    %89 = vmatprep.subr.mxu0 0.0
    %90 = vmatpush2.msra.mxu0 0.0
    %91 = vmatprep.subr.mxu0 0.0
    %92 = vmatpush2.msra.mxu0 0.0
    %93 = vmatprep.subr.mxu0 0.0
    %94 = vmatpush2.msra.mxu0 0.0
    %95 = vmatprep.subr.mxu0 0.0
    %96 = vmatpush2.msra.mxu0 0.0
    %97 = vmatprep.subr.mxu0 0.0
    %98 = vmatpush2.msra.mxu0 0.0
    %99 = vmatprep.subr.mxu0 0.0
    %100 = vmatpush2.msra.mxu0 0.0
    %101 = vmatprep.subr.mxu0 0.0
    %102 = vmatpush2.msra.mxu0 0.0
    %103 = vmatprep.subr.mxu0 0.0
    %104 = vmatpush2.msra.mxu0 0.0
    %105 = vmatprep.subr.mxu0 0.0
    %106 = vmatpush2.msra.mxu0 0.0
    %107 = vmatprep.subr.mxu0 0.0
    %108 = vmatpush2.msra.mxu0 0.0
    %109 = vmatprep.subr.mxu0 0.0
    %110 = vmatpush2.msra.mxu0 0.0
    %111 = vmatprep.subr.mxu0 0.0
    %112 = vmatpush2.msra.mxu0 0.0
    %113 = vmatprep.subr.mxu0 0.0
    %114 = vmatpush2.msra.mxu0 0.0
    %115 = vmatprep.subr.mxu0 0.0
    %116 = vmatpush2.msra.mxu0 0.0
    %117 = vmatprep.subr.mxu0 0.0
    %118 = vmatpush2.msra.mxu0 0.0
    %119 = vmatprep.mubr.f32.mxu0 0.0
    %120 = vmatmul.mubr.f32.gmra.mxu0 %v53
    %v121 = vpop.f32.mrf.mxu0
    %v122 = vadd.f32 %v49, %v121
    %v123 = vpop.f32.mrf.mxu0
    %124 = vdwg.mxu0
    %v125 = vxor.u32 %v122, 2147483648
    %v126 = vmul.f32 %v125, 1.442695
    %v127 = vpow.pop %v126
    %v128 = vadd.f32 %v127, 1.0
    %v129 = vrcp.pop %v128
    %v130 = vmul.f32 1.0, %v129
    %v131 = vmul.f32 %v130, %v28
    %133 = vrot.lane.b32.xlu0 %v131, 32
    %v134 = vpop.permute.xlu0 %133
    %v136 = vsel %vm34, %v27, %v134
    %v137 = vld [vmem:[%s5] sm:$0xff]
    %v138 = vld [vmem:[%s5 + $0x8] sm:$0xff]
    %v139 = vld [vmem:[%s5 + $0x10] sm:$0xff]
    %v140 = vld [vmem:[%s5 + $0x18] sm:$0xff]
    %v141 = vld [vmem:[%s5 + $0x20] sm:$0xff]
    %v142 = vld [vmem:[%s5 + $0x28] sm:$0xff]
    %v143 = vld [vmem:[%s5 + $0x30] sm:$0xff]
    %v144 = vld [vmem:[%s5 + $0x38] sm:$0xff]
    %v145 = vld [vmem:[%s6] sm:$0x1]
    %v147 = vlaneseq
    %v148 = vshrl.u32 %v147, 7
    %v149 = vsub.s32 0, %v148
    %v150 = vrot.slane %v145, %v149
    %v153 = vsel %vm51, %v136, 0
    %155 = vmatprep.subr.mxu0 0.0
    %156 = vmatpush1.msra.mxu0 0.0
    %157 = vmatprep.subr.mxu0 0.0
    %158 = vmatpush1.msra.mxu0 0.0
    %159 = vmatprep.subr.mxu0 0.0
    %160 = vmatpush1.msra.mxu0 0.0
    %161 = vmatprep.subr.mxu0 0.0
    %162 = vmatpush1.msra.mxu0 0.0
    %163 = vmatprep.subr.mxu0 0.0
    %164 = vmatpush1.msra.mxu0 0.0
    %165 = vmatprep.subr.mxu0 0.0
    %166 = vmatpush1.msra.mxu0 0.0
    %167 = vmatprep.subr.mxu0 0.0
    %168 = vmatpush1.msra.mxu0 0.0
    %169 = vmatprep.subr.mxu0 0.0
    %170 = vmatpush1.msra.mxu0 0.0
    %171 = vmatprep.subr.mxu0 0.0
    %172 = vmatpush1.msra.mxu0 %v144
    %173 = vmatprep.subr.mxu0 0.0
    %174 = vmatpush1.msra.mxu0 %v143
    %175 = vmatprep.subr.mxu0 0.0
    %176 = vmatpush1.msra.mxu0 %v142
    %177 = vmatprep.subr.mxu0 0.0
    %178 = vmatpush1.msra.mxu0 %v141
    %179 = vmatprep.subr.mxu0 0.0
    %180 = vmatpush1.msra.mxu0 %v140
    %181 = vmatprep.subr.mxu0 0.0
    %182 = vmatpush1.msra.mxu0 %v139
    %183 = vmatprep.subr.mxu0 0.0
    %184 = vmatpush1.msra.mxu0 %v138
    %185 = vmatprep.subr.mxu0 0.0
    %186 = vmatpush1.msra.mxu0 %v137
    %187 = vmatprep.subr.mxu0 0.0
    %188 = vmatpush2.msra.mxu0 0.0
    %189 = vmatprep.subr.mxu0 0.0
    %190 = vmatpush2.msra.mxu0 0.0
    %191 = vmatprep.subr.mxu0 0.0
    %192 = vmatpush2.msra.mxu0 0.0
    %193 = vmatprep.subr.mxu0 0.0
    %194 = vmatpush2.msra.mxu0 0.0
    %195 = vmatprep.subr.mxu0 0.0
    %196 = vmatpush2.msra.mxu0 0.0
    %197 = vmatprep.subr.mxu0 0.0
    %198 = vmatpush2.msra.mxu0 0.0
    %199 = vmatprep.subr.mxu0 0.0
    %200 = vmatpush2.msra.mxu0 0.0
    %201 = vmatprep.subr.mxu0 0.0
    %202 = vmatpush2.msra.mxu0 0.0
    %203 = vmatprep.subr.mxu0 0.0
    %204 = vmatpush2.msra.mxu0 0.0
    %205 = vmatprep.subr.mxu0 0.0
    %206 = vmatpush2.msra.mxu0 0.0
    %207 = vmatprep.subr.mxu0 0.0
    %208 = vmatpush2.msra.mxu0 0.0
    %209 = vmatprep.subr.mxu0 0.0
    %210 = vmatpush2.msra.mxu0 0.0
    %211 = vmatprep.subr.mxu0 0.0
    %212 = vmatpush2.msra.mxu0 0.0
    %213 = vmatprep.subr.mxu0 0.0
    %214 = vmatpush2.msra.mxu0 0.0
    %215 = vmatprep.subr.mxu0 0.0
    %216 = vmatpush2.msra.mxu0 0.0
    %217 = vmatprep.subr.mxu0 0.0
    %218 = vmatpush2.msra.mxu0 0.0
    %219 = vmatprep.mubr.f32.mxu0 0.0
    %220 = vmatmul.mubr.f32.gmra.mxu0 %v153
    %v221 = vpop.f32.mrf.mxu0
    %v222 = vadd.f32 %v150, %v221
    %v223 = vpop.f32.mrf.mxu0
    %224 = vdwg.mxu0
    %v225 = vtanh.pop %v222
    %227 = vset.pattern.permute.xlu0 0
    %228 = vperm.xlu0 %227, %v29
    %v229 = vpop.permute.xlu0 %228
    %v231 = vmul.f32 %v229, %v130
    %v232 = vsub.f32 1.0, %v231
    %v233 = vmul.f32 %v232, %v32
    %235 = vrot.lane.b32.xlu0 %v225, 32
    %v236 = vpop.permute.xlu0 %235
    %v238 = vmul.f32 %v231, %v236
    %v239 = vadd.f32 %v233, %v238
    %241 = vrot.lane.b32.xlu0 %v239, 96
    %v242 = vpop.permute.xlu0 %241
    %244 = vst.msk [vmem:[#allocation2] sm:$0xff] %vm34, %v242
    // Predicated region
    $region30: #{tpu_custom_call.1} parent=1 // pred_check
      _
    $region31: #{tpu_custom_call.1} parent=1 // pred_check_branch
      %246 = sbr.rel (0) target = $region33
    $region32: #{tpu_custom_call.1} parent=1 // pred_region
      %s248 = ssub.s32 128, 128
      %249 = vsyncadd [#allocation3], %s248
      %s251 = sshll.u32 [#allocation2], 4
      %s252 = int_to_ptr.vmem [resolvable:$true] %s251
      %254 = dma.vmem_to_hbm [thread:$0]  %s252, 128, %s7, [#allocation3]
    $region33: #{tpu_custom_call.1} parent=1 // pred_fallthru
      _
    // Predicated region
    $region34: #{tpu_custom_call.1} parent=1 // pred_check
      _
    $region35: #{tpu_custom_call.1} parent=1 // pred_check_branch
      %256 = sbr.rel (0) target = $region37
    $region36: #{tpu_custom_call.1} parent=1 // pred_region
      %257 = dma.done [#allocation3], 128
    $region37: #{tpu_custom_call.1} parent=1 // pred_fallthru
      _
    %258 = vsyncpa [#allocation3], 1

</llo_original>
